<compile_context>
chip_gen: v7x
topology: tpu7x:2x2x1
jax: 0.10.0
libtpu: 0.0.40
codegen_flags: <defaults>
</compile_context>

<pallas_src>
import functools

import jax
import jax.numpy as jnp
from jax import lax
from jax.experimental import pallas as pl
from jax.experimental.pallas import tpu as pltpu


def _sparse_attn_kernel(x_ref, wqk_ref, brow_ref, v_ref, out_ref, *, num_topk):
    mm_dtype = wqk_ref.dtype  # f32 or bf16 (matmul-input dtype)

    # dots = x @ W_qk + b_row   (Wq and kT already folded into W_qk)
    x = x_ref[...].astype(mm_dtype)
    dots = jnp.dot(x, wqk_ref[...],
                   preferred_element_type=jnp.float32) + brow_ref[...]

    neg_inf = jnp.float32(-jnp.inf)

    # Iterative top-k threshold: after num_topk rounds of "take row max, knock
    # it out", `thresh` is the k-th largest value per row.  One XLU reduce per
    # round; ties are knocked out together (measure-zero for real-valued dots,
    # so this matches torch.topk in practice).  Round-0 max is reused as the
    # softmax max.
    work = dots
    row_max = None
    thresh = None
    for i in range(num_topk):  # static python int -> unrolled
        m = jnp.max(work, axis=-1, keepdims=True)
        if i == 0:
            row_max = m
        thresh = m
        if i < num_topk - 1:
            work = jnp.where(work == m, neg_inf, work)

    # Masked exp.  Entries below the threshold get weight exactly 0, identical
    # to the reference's masked_fill(-finfo.max) + softmax (whose exp
    # underflows to 0 for those entries).
    keep = dots >= thresh
    e = jnp.where(keep, jnp.exp(dots - row_max), jnp.float32(0.0))
    denom = jnp.sum(e, axis=-1, keepdims=True)

    # EUP approx reciprocal seed + one Newton step -> ~f32 accuracy.
    r = pl.reciprocal(denom, approx=True)
    r = r * (jnp.float32(2.0) - denom * r)

    # out = (e @ v) * r : normalize AFTER the matmul (per-row scalar commutes),
    # [TB,V]x[V,D] on the MXU, then a [TB,D] scale instead of a [TB,V] one.
    out = jnp.dot(e.astype(v_ref.dtype), v_ref[...],
                  preferred_element_type=jnp.float32) * r
    out_ref[...] = out.astype(out_ref.dtype)


def precompute_params(codebook, wq, bq, wk, bk, wv, bv,
                      matmul_dtype=jnp.float32):
    """x-independent precompute; redo only when weights/codebook change.

    Returns:
      w_qk  [D, V]   = Wq @ k.T            (matmul_dtype)
      b_row [1, V]   = bq @ k.T            (float32)
      v     [V, D]   = codebook @ Wv + bv  (matmul_dtype)
    so the kernel's dots are simply x @ w_qk + b_row.
    """
    D = wk.shape[0]
    # Fused k|v projection of the codebook fills the wide MXU.
    w_kv = jnp.concatenate([wk, wv], axis=1)          # [D, 2D]
    b_kv = jnp.concatenate([bk, bv], axis=1)          # [1, 2D]
    kv = codebook @ w_kv + b_kv                       # [V, 2D]
    k = kv[:, :D]                                     # [V, D]
    v = kv[:, D:]                                     # [V, D]
    kT = k.T                                          # [D, V]
    w_qk = wq @ kT                                    # [D, V]
    b_row = bq @ kT                                   # [1, V]
    return (w_qk.astype(matmul_dtype),
            b_row.astype(jnp.float32),
            v.astype(matmul_dtype))


def sparse_attn_bottleneck(x, w_qk, b_row, v, num_topk, *, block_b=2048):
    """Pallas kernel: fused dots + sparse top-k masked softmax + attn@v."""
    assert num_topk >= 1, "num_topk must be >= 1"
    B, D = x.shape
    V = v.shape[0]
    assert num_topk <= V
    assert w_qk.shape == (D, V) and b_row.shape == (1, V) and v.shape == (V, D)

    # --- batch tiling -------------------------------------------------------
    bb = min(block_b, B)
    if B >= 16:
        # keep at least 2 grid programs so the "parallel" axis can shard
        # across both TensorCores on v7x.
        bb = min(bb, -(-B // 2))
    bb = max(8, (bb // 8) * 8)          # sublane alignment
    num_blocks = -(-B // bb)
    b_pad = num_blocks * bb
    x_p = x if b_pad == B else jnp.pad(x, ((0, b_pad - B), (0, 0)))
    grid = (num_blocks,)

    # --- scoped VMEM sizing (v5e default 16 MiB, v6e/v7x 32 MiB; v7x phys 64)
    mm_bytes = jnp.dtype(w_qk.dtype).itemsize
    est = (
        2 * 2 * bb * D * 4                      # double-buffered x / out tiles
        + 2 * (D * V + V * D) * mm_bytes        # resident w_qk, v (dbl-buffered)
        + 2 * V * 4                             # b_row
        + 5 * bb * V * 4                        # dots / work / e / keep temps
    )
    vmem_limit = min(64 * 1024 * 1024,
                     max(16 * 1024 * 1024, int(est * 3 // 2) + (1 << 20)))

    kernel = functools.partial(_sparse_attn_kernel, num_topk=num_topk)
    out = pl.pallas_call(
        kernel,
        out_shape=jax.ShapeDtypeStruct((b_pad, D), jnp.float32),
        grid=grid,
        in_specs=[
            pl.BlockSpec((bb, D), lambda i: (i, 0)),   # x      (batch-tiled)
            pl.BlockSpec((D, V), lambda i: (0, 0)),    # w_qk   (resident)
            pl.BlockSpec((1, V), lambda i: (0, 0)),    # b_row  (resident)
            pl.BlockSpec((V, D), lambda i: (0, 0)),    # v      (resident)
        ],
        out_specs=pl.BlockSpec((bb, D), lambda i: (i, 0)),
        compiler_params=pltpu.CompilerParams(
            dimension_semantics=("parallel",),
            vmem_limit_bytes=vmem_limit),
    )(x_p, w_qk, b_row, v)

    return out if b_pad == B else out[:B]


def sparse_attn_forward(x, codebook, wq, bq, wk, bk, wv, bv, num_topk,
                        matmul_dtype=jnp.float32):
    """Full module forward (matches the PyTorch SparseAttnBottleneck)."""
    w_qk, b_row, v = precompute_params(codebook, wq, bq, wk, bk, wv, bv,
                                       matmul_dtype=matmul_dtype)
    return sparse_attn_bottleneck(x, w_qk, b_row, v, num_topk)


def _reference(x, codebook, wq, bq, wk, bk, wv, bv, num_topk):
    """Pure-JAX reference matching the PyTorch forward."""
    q = x @ wq + bq
    k = codebook @ wk + bk
    v = codebook @ wv + bv
    dots = jnp.einsum("bd,kd->bk", q, k)
    top = lax.top_k(dots, num_topk)[0]
    vk = top[..., -1:]
    mask_value = -jnp.finfo(dots.dtype).max
    dots = jnp.where(dots < vk, mask_value, dots)
    attn = jax.nn.softmax(dots, axis=-1)
    return jnp.einsum("bk,kd->bd", attn, v)


if __name__ == "__main__":
    B, V, D, NUM_TOPK = 8, 256, 128, 4

    key = jax.random.PRNGKey(0)
    kx, kcb, kwq, kbq, kwk, kbk, kwv, kbv = jax.random.split(key, 8)

    x = jax.random.normal(kx, (B, D), dtype=jnp.float32)
    codebook = jax.random.normal(kcb, (V, D), dtype=jnp.float32)

    # Deterministic "kaiming-ish" uniform init for the linear layers.
    bound = 1.0 / jnp.sqrt(D)
    wq = jax.random.uniform(kwq, (D, D), jnp.float32, -bound, bound)
    bq = jax.random.uniform(kbq, (1, D), jnp.float32, -bound, bound)
    wk = jax.random.uniform(kwk, (D, D), jnp.float32, -bound, bound)
    bk = jax.random.uniform(kbk, (1, D), jnp.float32, -bound, bound)
    wv = jax.random.uniform(kwv, (D, D), jnp.float32, -bound, bound)
    bv = jax.random.uniform(kbv, (1, D), jnp.float32, -bound, bound)

    # f32 matmul-input path (default): checked tightly against the reference.
    out = sparse_attn_forward(x, codebook, wq, bq, wk, bk, wv, bv, NUM_TOPK)
    out = jax.block_until_ready(out)

    ref = _reference(x, codebook, wq, bq, wk, bk, wv, bv, NUM_TOPK)
    ref = jax.block_until_ready(ref)

    assert out.shape == (B, D)
    assert jnp.allclose(out, ref, atol=1e-4, rtol=1e-4), "mismatch vs reference"

    # bf16 matmul-input path (perf option for large-batch production runs):
    # verify it compiles, runs and stays finite.  Top-k selection near ties can
    # legitimately differ from the f32 reference, so no tight tolerance here.
    out_bf16 = sparse_attn_forward(x, codebook, wq, bq, wk, bk, wv, bv,
                                   NUM_TOPK, matmul_dtype=jnp.bfloat16)
    out_bf16 = jax.block_until_ready(out_bf16)
    assert out_bf16.shape == (B, D)
    assert bool(jnp.all(jnp.isfinite(out_bf16)))

    print("KERNEL_OK")
</pallas_src>

<mosaic_0001>
module attributes {stable_mosaic.version = 11 : i64} {
  func.func @_sparse_attn_kernel(%arg0: i32, %arg1: memref<8x128xf32, #tpu.memory_space<vmem>>, %arg2: memref<128x256xf32, #tpu.memory_space<vmem>>, %arg3: memref<1x256xf32, #tpu.memory_space<vmem>>, %arg4: memref<256x128xf32, #tpu.memory_space<vmem>>, %arg5: memref<8x128xf32, #tpu.memory_space<vmem>>) attributes {dimension_semantics = [#tpu.dimension_semantics<parallel>], iteration_bounds = array<i64: 1>, scalar_prefetch = 0 : i64, scratch_operands = 0 : i64, tpu.core_type = #tpu.core_type<tc>, window_params = [{transform_indices = @transform_0, window_bounds = array<i64: 8, 128>}, {pipeline_mode = #tpu.pipeline_mode<synchronous>, transform_indices = @transform_1, window_bounds = array<i64: 128, 256>}, {pipeline_mode = #tpu.pipeline_mode<synchronous>, transform_indices = @transform_2, window_bounds = array<i64: 1, 256>}, {pipeline_mode = #tpu.pipeline_mode<synchronous>, transform_indices = @transform_3, window_bounds = array<i64: 256, 128>}, {transform_indices = @transform_4, window_bounds = array<i64: 8, 128>}]} {
    %c0 = arith.constant 0 : index
    %c0_0 = arith.constant 0 : index
    %0 = vector.load %arg1[%c0, %c0_0] : memref<8x128xf32, #tpu.memory_space<vmem>>, vector<8x128xf32>
    %c0_1 = arith.constant 0 : index
    %c0_2 = arith.constant 0 : index
    %1 = vector.load %arg2[%c0_1, %c0_2] : memref<128x256xf32, #tpu.memory_space<vmem>>, vector<128x256xf32>
    %cst = arith.constant dense<0.000000e+00> : vector<8x256xf32>
    %2 = tpu.matmul %0, %1, %cst {dimension_numbers = #tpu.dot_dimension_numbers<[1], [0], [0], [1], [0, 0, 1, 1], [], []>} : vector<8x128xf32>, vector<128x256xf32>, vector<8x256xf32> -> vector<8x256xf32>
    %c0_3 = arith.constant 0 : index
    %c0_4 = arith.constant 0 : index
    %3 = vector.load %arg3[%c0_3, %c0_4] : memref<1x256xf32, #tpu.memory_space<vmem>>, vector<1x256xf32>
    %4 = vector.broadcast %3 : vector<1x256xf32> to vector<8x256xf32>
    %5 = arith.addf %2, %4 : vector<8x256xf32>
    %cst_5 = arith.constant dense<0xFF800000> : vector<8xf32>
    %6 = vector.multi_reduction <maximumf>, %5, %cst_5 [1] : vector<8x256xf32> to vector<8xf32>
    %7 = vector.shape_cast %6 : vector<8xf32> to vector<8x1xf32>
    %8 = vector.broadcast %7 : vector<8x1xf32> to vector<8x256xf32>
    %9 = arith.cmpf oeq, %5, %8 : vector<8x256xf32>
    %cst_6 = arith.constant 0xFF800000 : f32
    %10 = vector.broadcast %cst_6 : f32 to vector<8x256xf32>
    %11 = arith.select %9, %10, %5 : vector<8x256xi1>, vector<8x256xf32>
    %cst_7 = arith.constant dense<0xFF800000> : vector<8xf32>
    %12 = vector.multi_reduction <maximumf>, %11, %cst_7 [1] : vector<8x256xf32> to vector<8xf32>
    %13 = vector.shape_cast %12 : vector<8xf32> to vector<8x1xf32>
    %14 = vector.broadcast %13 : vector<8x1xf32> to vector<8x256xf32>
    %15 = arith.cmpf oeq, %11, %14 : vector<8x256xf32>
    %cst_8 = arith.constant 0xFF800000 : f32
    %16 = vector.broadcast %cst_8 : f32 to vector<8x256xf32>
    %17 = arith.select %15, %16, %11 : vector<8x256xi1>, vector<8x256xf32>
    %cst_9 = arith.constant dense<0xFF800000> : vector<8xf32>
    %18 = vector.multi_reduction <maximumf>, %17, %cst_9 [1] : vector<8x256xf32> to vector<8xf32>
    %19 = vector.shape_cast %18 : vector<8xf32> to vector<8x1xf32>
    %20 = vector.broadcast %19 : vector<8x1xf32> to vector<8x256xf32>
    %21 = arith.cmpf oeq, %17, %20 : vector<8x256xf32>
    %cst_10 = arith.constant 0xFF800000 : f32
    %22 = vector.broadcast %cst_10 : f32 to vector<8x256xf32>
    %23 = arith.select %21, %22, %17 : vector<8x256xi1>, vector<8x256xf32>
    %cst_11 = arith.constant dense<0xFF800000> : vector<8xf32>
    %24 = vector.multi_reduction <maximumf>, %23, %cst_11 [1] : vector<8x256xf32> to vector<8xf32>
    %25 = vector.shape_cast %24 : vector<8xf32> to vector<8x1xf32>
    %26 = vector.broadcast %25 : vector<8x1xf32> to vector<8x256xf32>
    %27 = arith.cmpf oge, %5, %26 : vector<8x256xf32>
    %28 = vector.broadcast %7 : vector<8x1xf32> to vector<8x256xf32>
    %29 = arith.subf %5, %28 : vector<8x256xf32>
    %30 = math.exp %29 : vector<8x256xf32>
    %cst_12 = arith.constant 0.000000e+00 : f32
    %31 = vector.broadcast %cst_12 : f32 to vector<8x256xf32>
    %32 = arith.select %27, %30, %31 : vector<8x256xi1>, vector<8x256xf32>
    %cst_13 = arith.constant dense<0.000000e+00> : vector<8xf32>
    %33 = vector.multi_reduction <add>, %32, %cst_13 [1] : vector<8x256xf32> to vector<8xf32>
    %34 = vector.shape_cast %33 : vector<8xf32> to vector<8x1xf32>
    %35 = tpu.reciprocal %34 {approx = true} : vector<8x1xf32> -> vector<8x1xf32>
    %36 = arith.mulf %34, %35 : vector<8x1xf32>
    %cst_14 = arith.constant 2.000000e+00 : f32
    %37 = vector.broadcast %cst_14 : f32 to vector<8x1xf32>
    %38 = arith.subf %37, %36 : vector<8x1xf32>
    %39 = arith.mulf %35, %38 : vector<8x1xf32>
    %c0_15 = arith.constant 0 : index
    %c0_16 = arith.constant 0 : index
    %40 = vector.load %arg4[%c0_15, %c0_16] : memref<256x128xf32, #tpu.memory_space<vmem>>, vector<256x128xf32>
    %cst_17 = arith.constant dense<0.000000e+00> : vector<8x128xf32>
    %41 = tpu.matmul %32, %40, %cst_17 {dimension_numbers = #tpu.dot_dimension_numbers<[1], [0], [0], [1], [0, 0, 1, 1], [], []>} : vector<8x256xf32>, vector<256x128xf32>, vector<8x128xf32> -> vector<8x128xf32>
    %42 = vector.broadcast %39 : vector<8x1xf32> to vector<8x128xf32>
    %43 = arith.mulf %41, %42 : vector<8x128xf32>
    %c0_18 = arith.constant 0 : index
    %c0_19 = arith.constant 0 : index
    %44 = vector.load %arg5[%c0_18, %c0_19] : memref<8x128xf32, #tpu.memory_space<vmem>>, vector<8x128xf32>
    tpu.vector_store %arg5[%c0_18, %c0_19], %43 {strides = array<i32>} : memref<8x128xf32, #tpu.memory_space<vmem>>, vector<8x128xf32>,
    return
  }
  func.func @transform_0(%arg0: i32) -> (i32, i32) {
    %c0_i32 = arith.constant 0 : i32
    %c0_i32_0 = arith.constant 0 : i32
    return %arg0, %c0_i32 : i32, i32
  }
  func.func @transform_1(%arg0: i32) -> (i32, i32) {
    %c0_i32 = arith.constant 0 : i32
    %c0_i32_0 = arith.constant 0 : i32
    %c0_i32_1 = arith.constant 0 : i32
    return %c0_i32, %c0_i32_0 : i32, i32
  }
  func.func @transform_2(%arg0: i32) -> (i32, i32) {
    %c0_i32 = arith.constant 0 : i32
    %c0_i32_0 = arith.constant 0 : i32
    %c0_i32_1 = arith.constant 0 : i32
    return %c0_i32, %c0_i32_0 : i32, i32
  }
  func.func @transform_3(%arg0: i32) -> (i32, i32) {
    %c0_i32 = arith.constant 0 : i32
    %c0_i32_0 = arith.constant 0 : i32
    %c0_i32_1 = arith.constant 0 : i32
    return %c0_i32, %c0_i32_0 : i32, i32
  }
  func.func @transform_4(%arg0: i32) -> (i32, i32) {
    %c0_i32 = arith.constant 0 : i32
    %c0_i32_0 = arith.constant 0 : i32
    return %arg0, %c0_i32 : i32, i32
  }
}

</mosaic_0001>

<llo_original>
// kernel: tpu_custom_call.1
$region0: #{tpu_custom_call.1}
  #allocation0 [shape = 'u32[]', space=smem, size = 0x4, offset = 0x4, fixed_abs, tag = 'smem constant byte address 0x4 - core index']
  #allocation1 [shape = 'u32[144,128]{1,0:T(1,128)}', space=vmem, size = 0x12000, scoped, tag = 'internal scratch']
  %s0 = inlined_call_operand.hbm [shape: f32[8,128], index: 0, kind: input, shape index: {}]
  %s1 = inlined_call_operand.hbm [shape: f32[128,256], index: 1, kind: input, shape index: {}]
  %s2 = inlined_call_operand.vmem [shape: f32[1,256], index: 2, kind: input, shape index: {}]
  %s3 = inlined_call_operand.hbm [shape: f32[256,128], index: 3, kind: input, shape index: {}]
  %s4 = inlined_call_operand.hbm [shape: f32[8,128], index: 4, kind: output, shape index: {}]
  %s5 = sld [smem:[#allocation0]]
  $region38: #{tpu_custom_call.1} parent=0
    _
  %s7 = ssub.s32 1, %s5
  %s8 = scalar_select 0, %s7, %s5
  $region1: #{tpu_custom_call.1} parent=0
    #allocation2 [shape = 'u8[4096]{0}', space=vmem, size = 0x1000, scoped, tag = 'input window, operand 0, single buffered']
    #allocation3 [shape = 's32[1]{0}', space=sflag, size = 0x4, scoped, tag = 'scoped memory for tpu_custom_call.1']
    #allocation4 [shape = 's32[1]{0}', space=sflag, size = 0x4, scoped, tag = 'scoped memory for tpu_custom_call.1']
    #allocation5 [shape = 'u8[131072]{0}', space=vmem, size = 0x20000, scoped, tag = 'input window, operand 1, single buffered']
    #allocation6 [shape = 's32[1]{0}', space=sflag, size = 0x4, scoped, tag = 'scoped memory for tpu_custom_call.1']
    #allocation7 [shape = 'u8[131072]{0}', space=vmem, size = 0x20000, scoped, tag = 'input window, operand 3, single buffered']
    #allocation8 [shape = 'u8[4096]{0}', space=vmem, size = 0x1000, scoped, tag = 'output window, operand 0, single buffered']
    %9 = vsyncpa [#allocation3], 0
    %10 = vsyncpa [#allocation6], 0
    %11 = vsyncpa [#allocation4], 0
    // Predicated region
    $region2: #{tpu_custom_call.1} parent=1 // pred_check
      _
    $region3: #{tpu_custom_call.1} parent=1 // pred_check_branch
      %13 = sbr.rel (0) target = $region5
    $region4: #{tpu_custom_call.1} parent=1 // pred_region
      %s15 = ssub.s32 128, 128
      %16 = vsyncadd [#allocation3], %s15
      %s18 = sshll.u32 [#allocation2], 4
      %s19 = int_to_ptr.vmem [resolvable:$true] %s18
      %21 = dma.hbm_to_vmem [thread:$0]  %s0, 128, %s19, [#allocation3]
    $region5: #{tpu_custom_call.1} parent=1 // pred_fallthru
      _
    // Predicated region
    $region6: #{tpu_custom_call.1} parent=1 // pred_check
      _
    $region7: #{tpu_custom_call.1} parent=1 // pred_check_branch
      %23 = sbr.rel (0) target = $region9
    $region8: #{tpu_custom_call.1} parent=1 // pred_region
      %s25 = ssub.s32 4096, 4096
      %26 = vsyncadd [#allocation6], %s25
      %s27 = sshll.u32 [#allocation5], 4
      %s28 = int_to_ptr.vmem [resolvable:$true] %s27
      %33 = dma.hbm_to_vmem [thread:$0]  %s1, 4096, %s28, [#allocation6], 256, 256, 16
    $region9: #{tpu_custom_call.1} parent=1 // pred_fallthru
      _
    // Predicated region
    $region10: #{tpu_custom_call.1} parent=1 // pred_check
      _
    $region11: #{tpu_custom_call.1} parent=1 // pred_check_branch
      %35 = sbr.rel (0) target = $region13
    $region12: #{tpu_custom_call.1} parent=1 // pred_region
      _
    $region13: #{tpu_custom_call.1} parent=1 // pred_fallthru
      _
    // Predicated region
    $region14: #{tpu_custom_call.1} parent=1 // pred_check
      _
    $region15: #{tpu_custom_call.1} parent=1 // pred_check_branch
      %37 = sbr.rel (0) target = $region17
    $region16: #{tpu_custom_call.1} parent=1 // pred_region
      %s39 = ssub.s32 4096, 4096
      %40 = vsyncadd [#allocation6], %s39
      %s41 = sshll.u32 [#allocation7], 4
      %s42 = int_to_ptr.vmem [resolvable:$true] %s41
      %47 = dma.hbm_to_vmem [thread:$0]  %s3, 4096, %s42, [#allocation6], 128, 128, 8
    $region17: #{tpu_custom_call.1} parent=1 // pred_fallthru
      _
    // Predicated region
    $region18: #{tpu_custom_call.1} parent=1 // pred_check
      _
    $region19: #{tpu_custom_call.1} parent=1 // pred_check_branch
      %49 = sbr.rel (0) target = $region21
    $region20: #{tpu_custom_call.1} parent=1 // pred_region
      %50 = dma.done [#allocation3], 128
    $region21: #{tpu_custom_call.1} parent=1 // pred_fallthru
      _
    // Predicated region
    $region22: #{tpu_custom_call.1} parent=1 // pred_check
      _
    $region23: #{tpu_custom_call.1} parent=1 // pred_check_branch
      %52 = sbr.rel (0) target = $region25
    $region24: #{tpu_custom_call.1} parent=1 // pred_region
      %53 = dma.done [#allocation6], 4096
    $region25: #{tpu_custom_call.1} parent=1 // pred_fallthru
      _
    // Predicated region
    $region26: #{tpu_custom_call.1} parent=1 // pred_check
      _
    $region27: #{tpu_custom_call.1} parent=1 // pred_check_branch
      %55 = sbr.rel (0) target = $region29
    $region28: #{tpu_custom_call.1} parent=1 // pred_region
      %56 = dma.done [#allocation6], 4096
    $region29: #{tpu_custom_call.1} parent=1 // pred_fallthru
      _
    %v57 = vld [vmem:[#allocation2] sm:$0xff]
    %v58 = vld [vmem:[#allocation5] sm:$0xff]
    %v59 = vld [vmem:[#allocation5 + $0x8] sm:$0xff]
    %v60 = vld [vmem:[#allocation5 + $0x10] sm:$0xff]
    %v61 = vld [vmem:[#allocation5 + $0x18] sm:$0xff]
    %v62 = vld [vmem:[#allocation5 + $0x20] sm:$0xff]
    %v63 = vld [vmem:[#allocation5 + $0x28] sm:$0xff]
    %v64 = vld [vmem:[#allocation5 + $0x30] sm:$0xff]
    %v65 = vld [vmem:[#allocation5 + $0x38] sm:$0xff]
    %v66 = vld [vmem:[#allocation5 + $0x40] sm:$0xff]
    %v67 = vld [vmem:[#allocation5 + $0x48] sm:$0xff]
    %v68 = vld [vmem:[#allocation5 + $0x50] sm:$0xff]
    %v69 = vld [vmem:[#allocation5 + $0x58] sm:$0xff]
    %v70 = vld [vmem:[#allocation5 + $0x60] sm:$0xff]
    %v71 = vld [vmem:[#allocation5 + $0x68] sm:$0xff]
    %v72 = vld [vmem:[#allocation5 + $0x70] sm:$0xff]
    %v73 = vld [vmem:[#allocation5 + $0x78] sm:$0xff]
    %v74 = vld [vmem:[#allocation5 + $0x80] sm:$0xff]
    %v75 = vld [vmem:[#allocation5 + $0x88] sm:$0xff]
    %v76 = vld [vmem:[#allocation5 + $0x90] sm:$0xff]
    %v77 = vld [vmem:[#allocation5 + $0x98] sm:$0xff]
    %v78 = vld [vmem:[#allocation5 + $0xa0] sm:$0xff]
    %v79 = vld [vmem:[#allocation5 + $0xa8] sm:$0xff]
    %v80 = vld [vmem:[#allocation5 + $0xb0] sm:$0xff]
    %v81 = vld [vmem:[#allocation5 + $0xb8] sm:$0xff]
    %v82 = vld [vmem:[#allocation5 + $0xc0] sm:$0xff]
    %v83 = vld [vmem:[#allocation5 + $0xc8] sm:$0xff]
    %v84 = vld [vmem:[#allocation5 + $0xd0] sm:$0xff]
    %v85 = vld [vmem:[#allocation5 + $0xd8] sm:$0xff]
    %v86 = vld [vmem:[#allocation5 + $0xe0] sm:$0xff]
    %v87 = vld [vmem:[#allocation5 + $0xe8] sm:$0xff]
    %v88 = vld [vmem:[#allocation5 + $0xf0] sm:$0xff]
    %v89 = vld [vmem:[#allocation5 + $0xf8] sm:$0xff]
    %v90 = vld [vmem:[%s2] sm:$0x3]
    %v92 = vlaneseq
    %v93 = vshrl.u32 %v92, 7
    %v94 = vsub.s32 0, %v93
    %v95 = vrot.slane %v90, %v94
    %v96 = vlaneseq
    %v97 = vshrl.u32 %v96, 7
    %v98 = vsub.s32 1, %v97
    %v99 = vrot.slane %v90, %v98
    %102 = vmatprep.subr.mxu0 %v59
    %103 = vmatpush1.msra.mxu0 %v58
    %104 = vmatprep.subr.mxu0 %v61
    %105 = vmatpush1.msra.mxu0 %v60
    %106 = vmatprep.subr.mxu0 %v63
    %107 = vmatpush1.msra.mxu0 %v62
    %108 = vmatprep.subr.mxu0 %v65
    %109 = vmatpush1.msra.mxu0 %v64
    %110 = vmatprep.subr.mxu0 %v67
    %111 = vmatpush1.msra.mxu0 %v66
    %112 = vmatprep.subr.mxu0 %v69
    %113 = vmatpush1.msra.mxu0 %v68
    %114 = vmatprep.subr.mxu0 %v71
    %115 = vmatpush1.msra.mxu0 %v70
    %116 = vmatprep.subr.mxu0 %v73
    %117 = vmatpush1.msra.mxu0 %v72
    %118 = vmatprep.subr.mxu0 %v75
    %119 = vmatpush1.msra.mxu0 %v74
    %120 = vmatprep.subr.mxu0 %v77
    %121 = vmatpush1.msra.mxu0 %v76
    %122 = vmatprep.subr.mxu0 %v79
    %123 = vmatpush1.msra.mxu0 %v78
    %124 = vmatprep.subr.mxu0 %v81
    %125 = vmatpush1.msra.mxu0 %v80
    %126 = vmatprep.subr.mxu0 %v83
    %127 = vmatpush1.msra.mxu0 %v82
    %128 = vmatprep.subr.mxu0 %v85
    %129 = vmatpush1.msra.mxu0 %v84
    %130 = vmatprep.subr.mxu0 %v87
    %131 = vmatpush1.msra.mxu0 %v86
    %132 = vmatprep.subr.mxu0 %v89
    %133 = vmatpush1.msra.mxu0 %v88
    %134 = vmatprep.subr.mxu0 0.0
    %135 = vmatpush1.msra.mxu0 0.0
    %136 = vmatprep.subr.mxu0 0.0
    %137 = vmatpush1.msra.mxu0 0.0
    %138 = vmatprep.subr.mxu0 0.0
    %139 = vmatpush1.msra.mxu0 0.0
    %140 = vmatprep.subr.mxu0 0.0
    %141 = vmatpush1.msra.mxu0 0.0
    %142 = vmatprep.subr.mxu0 0.0
    %143 = vmatpush1.msra.mxu0 0.0
    %144 = vmatprep.subr.mxu0 0.0
    %145 = vmatpush1.msra.mxu0 0.0
    %146 = vmatprep.subr.mxu0 0.0
    %147 = vmatpush1.msra.mxu0 0.0
    %148 = vmatprep.subr.mxu0 0.0
    %149 = vmatpush1.msra.mxu0 0.0
    %150 = vmatprep.subr.mxu0 0.0
    %151 = vmatpush1.msra.mxu0 0.0
    %152 = vmatprep.subr.mxu0 0.0
    %153 = vmatpush1.msra.mxu0 0.0
    %154 = vmatprep.subr.mxu0 0.0
    %155 = vmatpush1.msra.mxu0 0.0
    %156 = vmatprep.subr.mxu0 0.0
    %157 = vmatpush1.msra.mxu0 0.0
    %158 = vmatprep.subr.mxu0 0.0
    %159 = vmatpush1.msra.mxu0 0.0
    %160 = vmatprep.subr.mxu0 0.0
    %161 = vmatpush1.msra.mxu0 0.0
    %162 = vmatprep.subr.mxu0 0.0
    %163 = vmatpush1.msra.mxu0 0.0
    %164 = vmatprep.subr.mxu0 0.0
    %165 = vmatpush1.msra.mxu0 0.0
    %166 = vmatprep.mubr.f32.mxu0 0.0
    %167 = vmatmul.mubr.f32.gmra.mrb[0].mxu0 %v57
    %v168 = vpop.f32.mrb[0].mxu0
    %v169 = vadd.f32 %v95, %v168
    %v170 = vpop.f32.mrb[0].mxu0
    %v171 = vadd.f32 %v99, %v170
    %172 = vdwg.mxu0
    %v173 = vmax.f32 %v169, %v171
    %174 = vmax.xlane.f32.xlu0 %v173
    %v175 = vpop.xlane.xlu0 %174
    %vm176 = vcmp.eq.f32.partialorder %v169, %v175
    %vm177 = vcmp.eq.f32.partialorder %v171, %v175
    %v178 = vsel %vm176, -inf, %v169
    %v179 = vsel %vm177, -inf, %v171
    %v180 = vmax.f32 %v178, %v179
    %181 = vmax.xlane.f32.xlu0 %v180
    %v182 = vpop.xlane.xlu0 %181
    %vm183 = vcmp.eq.f32.partialorder %v178, %v182
    %vm184 = vcmp.eq.f32.partialorder %v179, %v182
    %v185 = vsel %vm183, -inf, %v178
    %v186 = vsel %vm184, -inf, %v179
    %v187 = vmax.f32 %v185, %v186
    %188 = vmax.xlane.f32.xlu0 %v187
    %v189 = vpop.xlane.xlu0 %188
    %vm190 = vcmp.eq.f32.partialorder %v185, %v189
    %vm191 = vcmp.eq.f32.partialorder %v186, %v189
    %v192 = vsel %vm190, -inf, %v185
    %v193 = vsel %vm191, -inf, %v186
    %v194 = vmax.f32 %v192, %v193
    %195 = vmax.xlane.f32.xlu0 %v194
    %v196 = vpop.xlane.xlu0 %195
    %vm197 = vcmp.ge.f32.partialorder %v169, %v196
    %vm198 = vcmp.ge.f32.partialorder %v171, %v196
    %v199 = vsub.f32 %v169, %v175
    %v200 = vsub.f32 %v171, %v175
    %v201 = vmul.f32 %v199, 1.442695
    %v202 = vpow.pop %v201
    %v203 = vmul.f32 %v200, 1.442695
    %v204 = vpow.pop %v203
    %v205 = vsel %vm197, %v202, 0.0
    %v206 = vsel %vm198, %v204, 0.0
    %v207 = vadd.f32 %v205, %v206
    %208 = vadd.xlane.f32.xlu0 %v207
    %v209 = vpop.xlane.xlu0 %208
    %v210 = vrcp.pop %v209
    %v211 = vmul.f32 %v209, %v210
    %v212 = vsub.f32 2.0, %v211
    %v213 = vmul.f32 %v210, %v212
    %v214 = vld [vmem:[#allocation7] sm:$0xff]
    %v215 = vld [vmem:[#allocation7 + $0x8] sm:$0xff]
    %v216 = vld [vmem:[#allocation7 + $0x10] sm:$0xff]
    %v217 = vld [vmem:[#allocation7 + $0x18] sm:$0xff]
    %v218 = vld [vmem:[#allocation7 + $0x20] sm:$0xff]
    %v219 = vld [vmem:[#allocation7 + $0x28] sm:$0xff]
    %v220 = vld [vmem:[#allocation7 + $0x30] sm:$0xff]
    %v221 = vld [vmem:[#allocation7 + $0x38] sm:$0xff]
    %v222 = vld [vmem:[#allocation7 + $0x40] sm:$0xff]
    %v223 = vld [vmem:[#allocation7 + $0x48] sm:$0xff]
    %v224 = vld [vmem:[#allocation7 + $0x50] sm:$0xff]
    %v225 = vld [vmem:[#allocation7 + $0x58] sm:$0xff]
    %v226 = vld [vmem:[#allocation7 + $0x60] sm:$0xff]
    %v227 = vld [vmem:[#allocation7 + $0x68] sm:$0xff]
    %v228 = vld [vmem:[#allocation7 + $0x70] sm:$0xff]
    %v229 = vld [vmem:[#allocation7 + $0x78] sm:$0xff]
    %v230 = vld [vmem:[#allocation7 + $0x80] sm:$0xff]
    %v231 = vld [vmem:[#allocation7 + $0x88] sm:$0xff]
    %v232 = vld [vmem:[#allocation7 + $0x90] sm:$0xff]
    %v233 = vld [vmem:[#allocation7 + $0x98] sm:$0xff]
    %v234 = vld [vmem:[#allocation7 + $0xa0] sm:$0xff]
    %v235 = vld [vmem:[#allocation7 + $0xa8] sm:$0xff]
    %v236 = vld [vmem:[#allocation7 + $0xb0] sm:$0xff]
    %v237 = vld [vmem:[#allocation7 + $0xb8] sm:$0xff]
    %v238 = vld [vmem:[#allocation7 + $0xc0] sm:$0xff]
    %v239 = vld [vmem:[#allocation7 + $0xc8] sm:$0xff]
    %v240 = vld [vmem:[#allocation7 + $0xd0] sm:$0xff]
    %v241 = vld [vmem:[#allocation7 + $0xd8] sm:$0xff]
    %v242 = vld [vmem:[#allocation7 + $0xe0] sm:$0xff]
    %v243 = vld [vmem:[#allocation7 + $0xe8] sm:$0xff]
    %v244 = vld [vmem:[#allocation7 + $0xf0] sm:$0xff]
    %v245 = vld [vmem:[#allocation7 + $0xf8] sm:$0xff]
    %246 = vmatprep.subr.mxu0 0.0
    %247 = vmatpush1.msra.mxu0 %v214
    %248 = vmatprep.subr.mxu0 0.0
    %249 = vmatpush1.msra.mxu0 %v215
    %250 = vmatprep.subr.mxu0 0.0
    %251 = vmatpush1.msra.mxu0 %v216
    %252 = vmatprep.subr.mxu0 0.0
    %253 = vmatpush1.msra.mxu0 %v217
    %254 = vmatprep.subr.mxu0 0.0
    %255 = vmatpush1.msra.mxu0 %v218
    %256 = vmatprep.subr.mxu0 0.0
    %257 = vmatpush1.msra.mxu0 %v219
    %258 = vmatprep.subr.mxu0 0.0
    %259 = vmatpush1.msra.mxu0 %v220
    %260 = vmatprep.subr.mxu0 0.0
    %261 = vmatpush1.msra.mxu0 %v221
    %262 = vmatprep.subr.mxu0 0.0
    %263 = vmatpush1.msra.mxu0 %v222
    %264 = vmatprep.subr.mxu0 0.0
    %265 = vmatpush1.msra.mxu0 %v223
    %266 = vmatprep.subr.mxu0 0.0
    %267 = vmatpush1.msra.mxu0 %v224
    %268 = vmatprep.subr.mxu0 0.0
    %269 = vmatpush1.msra.mxu0 %v225
    %270 = vmatprep.subr.mxu0 0.0
    %271 = vmatpush1.msra.mxu0 %v226
    %272 = vmatprep.subr.mxu0 0.0
    %273 = vmatpush1.msra.mxu0 %v227
    %274 = vmatprep.subr.mxu0 0.0
    %275 = vmatpush1.msra.mxu0 %v228
    %276 = vmatprep.subr.mxu0 0.0
    %277 = vmatpush1.msra.mxu0 %v229
    %278 = vmatprep.subr.mxu0 0.0
    %279 = vmatpush1.msra.mxu0 %v230
    %280 = vmatprep.subr.mxu0 0.0
    %281 = vmatpush1.msra.mxu0 %v231
    %282 = vmatprep.subr.mxu0 0.0
    %283 = vmatpush1.msra.mxu0 %v232
    %284 = vmatprep.subr.mxu0 0.0
    %285 = vmatpush1.msra.mxu0 %v233
    %286 = vmatprep.subr.mxu0 0.0
    %287 = vmatpush1.msra.mxu0 %v234
    %288 = vmatprep.subr.mxu0 0.0
    %289 = vmatpush1.msra.mxu0 %v235
    %290 = vmatprep.subr.mxu0 0.0
    %291 = vmatpush1.msra.mxu0 %v236
    %292 = vmatprep.subr.mxu0 0.0
    %293 = vmatpush1.msra.mxu0 %v237
    %294 = vmatprep.subr.mxu0 0.0
    %295 = vmatpush1.msra.mxu0 %v238
    %296 = vmatprep.subr.mxu0 0.0
    %297 = vmatpush1.msra.mxu0 %v239
    %298 = vmatprep.subr.mxu0 0.0
    %299 = vmatpush1.msra.mxu0 %v240
    %300 = vmatprep.subr.mxu0 0.0
    %301 = vmatpush1.msra.mxu0 %v241
    %302 = vmatprep.subr.mxu0 0.0
    %303 = vmatpush1.msra.mxu0 %v242
    %304 = vmatprep.subr.mxu0 0.0
    %305 = vmatpush1.msra.mxu0 %v243
    %306 = vmatprep.subr.mxu0 0.0
    %307 = vmatpush1.msra.mxu0 %v244
    %308 = vmatprep.subr.mxu0 0.0
    %309 = vmatpush1.msra.mxu0 %v245
    %310 = vmatprep.mubr.f32.mxu0 %v206
    %311 = vmatmul.mubr.f32.gmra.mrb[0].mxu0 %v205
    %v312 = vpop.f32.mrb[0].mxu0
    %v313 = vadd.f32 0.0, %v312
    %v314 = vpop.f32.mrb[0].mxu0
    %315 = vdwg.mxu0
    %v316 = vmul.f32 %v313, %v213
    %317 = vst [vmem:[#allocation8] sm:$0xff] %v316
    // Predicated region
    $region30: #{tpu_custom_call.1} parent=1 // pred_check
      _
    $region31: #{tpu_custom_call.1} parent=1 // pred_check_branch
      %319 = sbr.rel (0) target = $region33
    $region32: #{tpu_custom_call.1} parent=1 // pred_region
      %s321 = ssub.s32 128, 128
      %322 = vsyncadd [#allocation4], %s321
      %s324 = sshll.u32 [#allocation8], 4
      %s325 = int_to_ptr.vmem [resolvable:$true] %s324
      %327 = dma.vmem_to_hbm [thread:$0]  %s325, 128, %s4, [#allocation4]
    $region33: #{tpu_custom_call.1} parent=1 // pred_fallthru
      _
    // Predicated region
    $region34: #{tpu_custom_call.1} parent=1 // pred_check
      _
    $region35: #{tpu_custom_call.1} parent=1 // pred_check_branch
      %329 = sbr.rel (0) target = $region37
    $region36: #{tpu_custom_call.1} parent=1 // pred_region
      %330 = dma.done [#allocation4], 128
    $region37: #{tpu_custom_call.1} parent=1 // pred_fallthru
      _
    %331 = vsyncpa [#allocation3], 1
    %332 = vsyncpa [#allocation6], 1
    %333 = vsyncpa [#allocation4], 1

</llo_original>
